<compile_context>
chip_gen: v5e
topology: v5e:2x2
jax: 0.10.0
libtpu: 0.0.40
codegen_flags: <defaults>
</compile_context>

<pallas_src>
import math

import numpy as np
import jax
import jax.numpy as jnp
from jax.experimental import pallas as pl
from jax.experimental.pallas import tpu as pltpu


def _round_up(x, m):
    return ((x + m - 1) // m) * m


def _tensor_product_kernel(xj_ref, rbf_ref, w_ref, o_ref):
    # xj_ref : (tE, C)    edge-tile of neighbor features
    # rbf_ref: (tE, R)    edge-tile of radial basis values
    # w_ref  : (C, R*O)   full (small) weight, resident in VMEM
    # o_ref  : (tE, R*O)  lane-dense output tile
    xj = xj_ref[...].astype(jnp.float32)     # (tE, C)
    rbf = rbf_ref[...].astype(jnp.float32)   # (tE, R)

    num_radial = rbf.shape[1]
    out_ch = o_ref.shape[1] // num_radial

    # R small, static loop.  Fold the rbf scale into the narrow (C-wide) LHS,
    # then one (tE, C) @ (C, O) MXU matmul per radial, stored directly into a
    # lane-tile-aligned slice of the output (no f32 accumulator temp).
    for r in range(num_radial):
        sl = slice(r * out_ch, (r + 1) * out_ch)
        scaled = xj * rbf[:, r:r + 1]                       # (tE, C)
        o_ref[:, sl] = jnp.dot(
            scaled, w_ref[:, sl],
            preferred_element_type=jnp.float32,
        ).astype(o_ref.dtype)


def tensor_product(x_i, x_j, rbf, edge_vector, weight, *, edge_tile=1024,
                   out_dtype=None):
    """Pallas implementation of TensorProduct.forward.

    x_i and edge_vector are accepted for API parity but (as in the PyTorch
    module) are not used in the computation.

    Set out_dtype=jnp.bfloat16 when downstream allows it: the kernel is
    HBM-write bound, so halving the output bytes roughly halves wall-clock.
    """
    del x_i, edge_vector  # not used by the tensor product itself
    E, C = x_j.shape
    Cw, R, O = weight.shape
    assert C == Cw, "in_channels mismatch"
    assert rbf.shape == (E, R), "rbf shape mismatch"
    out_dtype = out_dtype if out_dtype is not None else x_j.dtype
    # Note: the dense, unmasked store path assumes O % 128 == 0 (true for the
    # intended configs).  Other O values remain correct, just slower stores.

    # Clamp the edge tile (sublane-aligned); no padding of E needed — the
    # cdiv grid lets Pallas mask the partial last block.
    edge_tile = max(8, min(edge_tile, _round_up(E, 8)))
    edge_tile = _round_up(edge_tile, 8)

    # Contiguous reshape (free) -> lane-aligned per-radial weight slices.
    w2d = weight.reshape(C, R * O)

    grid = (pl.cdiv(E, edge_tile),)

    out_bytes = np.dtype(out_dtype).itemsize
    in_bytes = np.dtype(x_j.dtype).itemsize
    cost = pl.CostEstimate(
        flops=2 * E * C * R * O,
        transcendentals=0,
        bytes_accessed=int(E * (R * O * out_bytes + (C + R) * in_bytes)
                           + C * R * O * np.dtype(weight.dtype).itemsize),
    )

    out2d = pl.pallas_call(
        _tensor_product_kernel,
        out_shape=jax.ShapeDtypeStruct((E, R * O), out_dtype),
        grid_spec=pltpu.PrefetchScalarGridSpec(
            num_scalar_prefetch=0,
            grid=grid,
            in_specs=[
                pl.BlockSpec((edge_tile, C), lambda i: (i, 0)),     # x_j tile
                pl.BlockSpec((edge_tile, R), lambda i: (i, 0)),     # rbf tile
                pl.BlockSpec((C, R * O), lambda i: (0, 0)),         # weight
            ],
            out_specs=pl.BlockSpec((edge_tile, R * O), lambda i: (i, 0)),
        ),
        compiler_params=pltpu.CompilerParams(
            dimension_semantics=("parallel",),
        ),
        cost_estimate=cost,
    )(x_j, rbf, w2d)

    # Row-major contiguous reshape back to the module's (E, R, O) layout.
    return out2d.reshape(E, R, O)


def xavier_uniform_weight(key, in_channels, num_radial, out_channels,
                          dtype=jnp.float32):
    # Matches torch.nn.init.xavier_uniform_ fan computation for a 3-D tensor
    # of shape (in_channels, num_radial, out_channels).
    fan_in = num_radial * out_channels
    fan_out = in_channels * out_channels
    bound = math.sqrt(6.0 / (fan_in + fan_out))
    return jax.random.uniform(
        key, (in_channels, num_radial, out_channels),
        minval=-bound, maxval=bound, dtype=dtype)


if __name__ == "__main__":
    # Small deterministic example; 200 % 64 != 0 exercises the masked partial
    # last block (pad-free path).
    num_edges = 200
    in_channels = 16
    num_radial = 8
    out_channels = 128

    key = jax.random.PRNGKey(0)
    k_w, k_xi, k_xj, k_rbf, k_ev = jax.random.split(key, 5)

    weight = xavier_uniform_weight(k_w, in_channels, num_radial, out_channels)
    x_i = jax.random.normal(k_xi, (num_edges, in_channels), dtype=jnp.float32)
    x_j = jax.random.normal(k_xj, (num_edges, in_channels), dtype=jnp.float32)
    rbf = jax.random.normal(k_rbf, (num_edges, num_radial), dtype=jnp.float32)
    edge_vector = jax.random.normal(k_ev, (num_edges, 3), dtype=jnp.float32)

    # Small edge_tile here just to exercise a multi-step grid (incl. a partial
    # block) at these tiny shapes; production should use the default 1024
    # (or 512 on v5e).
    out = tensor_product(x_i, x_j, rbf, edge_vector, weight, edge_tile=64)
    out = jax.block_until_ready(out)

    # Reference check against plain-JAX einsum (same semantics as PyTorch).
    ref = jnp.einsum("ec,cro->ero", x_j, weight) * rbf[:, :, None]
    assert out.shape == (num_edges, num_radial, out_channels)
    assert jnp.allclose(out, ref, atol=1e-5, rtol=1e-5), "mismatch vs reference"

    # bf16 output path (halves HBM write traffic); f32 accumulation inside.
    out_bf16 = tensor_product(x_i, x_j, rbf, edge_vector, weight,
                              edge_tile=64, out_dtype=jnp.bfloat16)
    out_bf16 = jax.block_until_ready(out_bf16)
    assert out_bf16.dtype == jnp.bfloat16
    assert jnp.allclose(out_bf16.astype(jnp.float32), ref,
                        atol=1e-2, rtol=1e-2), "bf16 path mismatch"

    print("KERNEL_OK")
</pallas_src>

<mosaic_0001>
module attributes {stable_mosaic.version = 11 : i64} {
  func.func @_tensor_product_kernel(%arg0: i32, %arg1: memref<64x16xf32, #tpu.memory_space<vmem>>, %arg2: memref<64x8xf32, #tpu.memory_space<vmem>>, %arg3: memref<16x1024xf32, #tpu.memory_space<vmem>>, %arg4: memref<64x1024xf32, #tpu.memory_space<vmem>>) attributes {dimension_semantics = [#tpu.dimension_semantics<parallel>], iteration_bounds = array<i64: 4>, scalar_prefetch = 0 : i64, scratch_operands = 0 : i64, tpu.core_type = #tpu.core_type<tc>, window_params = [{transform_indices = @transform_0, window_bounds = array<i64: 64, 16>}, {transform_indices = @transform_1, window_bounds = array<i64: 64, 8>}, {pipeline_mode = #tpu.pipeline_mode<synchronous>, transform_indices = @transform_2, window_bounds = array<i64: 16, 1024>}, {transform_indices = @transform_3, window_bounds = array<i64: 64, 1024>}]} {
    %c0 = arith.constant 0 : index
    %c0_0 = arith.constant 0 : index
    %0 = vector.load %arg1[%c0, %c0_0] : memref<64x16xf32, #tpu.memory_space<vmem>>, vector<64x16xf32>
    %c0_1 = arith.constant 0 : index
    %c0_2 = arith.constant 0 : index
    %1 = vector.load %arg2[%c0_1, %c0_2] : memref<64x8xf32, #tpu.memory_space<vmem>>, vector<64x8xf32>
    %2 = vector.extract_strided_slice %1 {offsets = [0, 0], sizes = [64, 1], strides = [1, 1]} : vector<64x8xf32> to vector<64x1xf32>
    %3 = vector.broadcast %2 : vector<64x1xf32> to vector<64x16xf32>
    %4 = arith.mulf %0, %3 : vector<64x16xf32>
    %c0_3 = arith.constant 0 : index
    %c0_4 = arith.constant 0 : index
    %5 = vector.load %arg3[%c0_3, %c0_4] : memref<16x1024xf32, #tpu.memory_space<vmem>>, vector<16x128xf32>
    %cst = arith.constant dense<0.000000e+00> : vector<64x128xf32>
    %6 = tpu.matmul %4, %5, %cst {dimension_numbers = #tpu.dot_dimension_numbers<[1], [0], [0], [1], [0, 0, 1, 1], [], []>} : vector<64x16xf32>, vector<16x128xf32>, vector<64x128xf32> -> vector<64x128xf32>
    %c0_5 = arith.constant 0 : index
    %c0_6 = arith.constant 0 : index
    %7 = vector.load %arg4[%c0_5, %c0_6] : memref<64x1024xf32, #tpu.memory_space<vmem>>, vector<64x128xf32>
    tpu.vector_store %arg4[%c0_5, %c0_6], %6 {strides = array<i32>} : memref<64x1024xf32, #tpu.memory_space<vmem>>, vector<64x128xf32>,
    %8 = vector.extract_strided_slice %1 {offsets = [0, 1], sizes = [64, 1], strides = [1, 1]} : vector<64x8xf32> to vector<64x1xf32>
    %9 = vector.broadcast %8 : vector<64x1xf32> to vector<64x16xf32>
    %10 = arith.mulf %0, %9 : vector<64x16xf32>
    %c0_7 = arith.constant 0 : index
    %c128 = arith.constant 128 : index
    %11 = vector.load %arg3[%c0_7, %c128] : memref<16x1024xf32, #tpu.memory_space<vmem>>, vector<16x128xf32>
    %cst_8 = arith.constant dense<0.000000e+00> : vector<64x128xf32>
    %12 = tpu.matmul %10, %11, %cst_8 {dimension_numbers = #tpu.dot_dimension_numbers<[1], [0], [0], [1], [0, 0, 1, 1], [], []>} : vector<64x16xf32>, vector<16x128xf32>, vector<64x128xf32> -> vector<64x128xf32>
    %c0_9 = arith.constant 0 : index
    %c128_10 = arith.constant 128 : index
    %13 = vector.load %arg4[%c0_9, %c128_10] : memref<64x1024xf32, #tpu.memory_space<vmem>>, vector<64x128xf32>
    tpu.vector_store %arg4[%c0_9, %c128_10], %12 {strides = array<i32>} : memref<64x1024xf32, #tpu.memory_space<vmem>>, vector<64x128xf32>,
    %14 = vector.extract_strided_slice %1 {offsets = [0, 2], sizes = [64, 1], strides = [1, 1]} : vector<64x8xf32> to vector<64x1xf32>
    %15 = vector.broadcast %14 : vector<64x1xf32> to vector<64x16xf32>
    %16 = arith.mulf %0, %15 : vector<64x16xf32>
    %c0_11 = arith.constant 0 : index
    %c256 = arith.constant 256 : index
    %17 = vector.load %arg3[%c0_11, %c256] : memref<16x1024xf32, #tpu.memory_space<vmem>>, vector<16x128xf32>
    %cst_12 = arith.constant dense<0.000000e+00> : vector<64x128xf32>
    %18 = tpu.matmul %16, %17, %cst_12 {dimension_numbers = #tpu.dot_dimension_numbers<[1], [0], [0], [1], [0, 0, 1, 1], [], []>} : vector<64x16xf32>, vector<16x128xf32>, vector<64x128xf32> -> vector<64x128xf32>
    %c0_13 = arith.constant 0 : index
    %c256_14 = arith.constant 256 : index
    %19 = vector.load %arg4[%c0_13, %c256_14] : memref<64x1024xf32, #tpu.memory_space<vmem>>, vector<64x128xf32>
    tpu.vector_store %arg4[%c0_13, %c256_14], %18 {strides = array<i32>} : memref<64x1024xf32, #tpu.memory_space<vmem>>, vector<64x128xf32>,
    %20 = vector.extract_strided_slice %1 {offsets = [0, 3], sizes = [64, 1], strides = [1, 1]} : vector<64x8xf32> to vector<64x1xf32>
    %21 = vector.broadcast %20 : vector<64x1xf32> to vector<64x16xf32>
    %22 = arith.mulf %0, %21 : vector<64x16xf32>
    %c0_15 = arith.constant 0 : index
    %c384 = arith.constant 384 : index
    %23 = vector.load %arg3[%c0_15, %c384] : memref<16x1024xf32, #tpu.memory_space<vmem>>, vector<16x128xf32>
    %cst_16 = arith.constant dense<0.000000e+00> : vector<64x128xf32>
    %24 = tpu.matmul %22, %23, %cst_16 {dimension_numbers = #tpu.dot_dimension_numbers<[1], [0], [0], [1], [0, 0, 1, 1], [], []>} : vector<64x16xf32>, vector<16x128xf32>, vector<64x128xf32> -> vector<64x128xf32>
    %c0_17 = arith.constant 0 : index
    %c384_18 = arith.constant 384 : index
    %25 = vector.load %arg4[%c0_17, %c384_18] : memref<64x1024xf32, #tpu.memory_space<vmem>>, vector<64x128xf32>
    tpu.vector_store %arg4[%c0_17, %c384_18], %24 {strides = array<i32>} : memref<64x1024xf32, #tpu.memory_space<vmem>>, vector<64x128xf32>,
    %26 = vector.extract_strided_slice %1 {offsets = [0, 4], sizes = [64, 1], strides = [1, 1]} : vector<64x8xf32> to vector<64x1xf32>
    %27 = vector.broadcast %26 : vector<64x1xf32> to vector<64x16xf32>
    %28 = arith.mulf %0, %27 : vector<64x16xf32>
    %c0_19 = arith.constant 0 : index
    %c512 = arith.constant 512 : index
    %29 = vector.load %arg3[%c0_19, %c512] : memref<16x1024xf32, #tpu.memory_space<vmem>>, vector<16x128xf32>
    %cst_20 = arith.constant dense<0.000000e+00> : vector<64x128xf32>
    %30 = tpu.matmul %28, %29, %cst_20 {dimension_numbers = #tpu.dot_dimension_numbers<[1], [0], [0], [1], [0, 0, 1, 1], [], []>} : vector<64x16xf32>, vector<16x128xf32>, vector<64x128xf32> -> vector<64x128xf32>
    %c0_21 = arith.constant 0 : index
    %c512_22 = arith.constant 512 : index
    %31 = vector.load %arg4[%c0_21, %c512_22] : memref<64x1024xf32, #tpu.memory_space<vmem>>, vector<64x128xf32>
    tpu.vector_store %arg4[%c0_21, %c512_22], %30 {strides = array<i32>} : memref<64x1024xf32, #tpu.memory_space<vmem>>, vector<64x128xf32>,
    %32 = vector.extract_strided_slice %1 {offsets = [0, 5], sizes = [64, 1], strides = [1, 1]} : vector<64x8xf32> to vector<64x1xf32>
    %33 = vector.broadcast %32 : vector<64x1xf32> to vector<64x16xf32>
    %34 = arith.mulf %0, %33 : vector<64x16xf32>
    %c0_23 = arith.constant 0 : index
    %c640 = arith.constant 640 : index
    %35 = vector.load %arg3[%c0_23, %c640] : memref<16x1024xf32, #tpu.memory_space<vmem>>, vector<16x128xf32>
    %cst_24 = arith.constant dense<0.000000e+00> : vector<64x128xf32>
    %36 = tpu.matmul %34, %35, %cst_24 {dimension_numbers = #tpu.dot_dimension_numbers<[1], [0], [0], [1], [0, 0, 1, 1], [], []>} : vector<64x16xf32>, vector<16x128xf32>, vector<64x128xf32> -> vector<64x128xf32>
    %c0_25 = arith.constant 0 : index
    %c640_26 = arith.constant 640 : index
    %37 = vector.load %arg4[%c0_25, %c640_26] : memref<64x1024xf32, #tpu.memory_space<vmem>>, vector<64x128xf32>
    tpu.vector_store %arg4[%c0_25, %c640_26], %36 {strides = array<i32>} : memref<64x1024xf32, #tpu.memory_space<vmem>>, vector<64x128xf32>,
    %38 = vector.extract_strided_slice %1 {offsets = [0, 6], sizes = [64, 1], strides = [1, 1]} : vector<64x8xf32> to vector<64x1xf32>
    %39 = vector.broadcast %38 : vector<64x1xf32> to vector<64x16xf32>
    %40 = arith.mulf %0, %39 : vector<64x16xf32>
    %c0_27 = arith.constant 0 : index
    %c768 = arith.constant 768 : index
    %41 = vector.load %arg3[%c0_27, %c768] : memref<16x1024xf32, #tpu.memory_space<vmem>>, vector<16x128xf32>
    %cst_28 = arith.constant dense<0.000000e+00> : vector<64x128xf32>
    %42 = tpu.matmul %40, %41, %cst_28 {dimension_numbers = #tpu.dot_dimension_numbers<[1], [0], [0], [1], [0, 0, 1, 1], [], []>} : vector<64x16xf32>, vector<16x128xf32>, vector<64x128xf32> -> vector<64x128xf32>
    %c0_29 = arith.constant 0 : index
    %c768_30 = arith.constant 768 : index
    %43 = vector.load %arg4[%c0_29, %c768_30] : memref<64x1024xf32, #tpu.memory_space<vmem>>, vector<64x128xf32>
    tpu.vector_store %arg4[%c0_29, %c768_30], %42 {strides = array<i32>} : memref<64x1024xf32, #tpu.memory_space<vmem>>, vector<64x128xf32>,
    %44 = vector.extract_strided_slice %1 {offsets = [0, 7], sizes = [64, 1], strides = [1, 1]} : vector<64x8xf32> to vector<64x1xf32>
    %45 = vector.broadcast %44 : vector<64x1xf32> to vector<64x16xf32>
    %46 = arith.mulf %0, %45 : vector<64x16xf32>
    %c0_31 = arith.constant 0 : index
    %c896 = arith.constant 896 : index
    %47 = vector.load %arg3[%c0_31, %c896] : memref<16x1024xf32, #tpu.memory_space<vmem>>, vector<16x128xf32>
    %cst_32 = arith.constant dense<0.000000e+00> : vector<64x128xf32>
    %48 = tpu.matmul %46, %47, %cst_32 {dimension_numbers = #tpu.dot_dimension_numbers<[1], [0], [0], [1], [0, 0, 1, 1], [], []>} : vector<64x16xf32>, vector<16x128xf32>, vector<64x128xf32> -> vector<64x128xf32>
    %c0_33 = arith.constant 0 : index
    %c896_34 = arith.constant 896 : index
    %49 = vector.load %arg4[%c0_33, %c896_34] : memref<64x1024xf32, #tpu.memory_space<vmem>>, vector<64x128xf32>
    tpu.vector_store %arg4[%c0_33, %c896_34], %48 {strides = array<i32>} : memref<64x1024xf32, #tpu.memory_space<vmem>>, vector<64x128xf32>,
    return
  }
  func.func @transform_0(%arg0: i32) -> (i32, i32) {
    %c0_i32 = arith.constant 0 : i32
    %c0_i32_0 = arith.constant 0 : i32
    return %arg0, %c0_i32 : i32, i32
  }
  func.func @transform_1(%arg0: i32) -> (i32, i32) {
    %c0_i32 = arith.constant 0 : i32
    %c0_i32_0 = arith.constant 0 : i32
    return %arg0, %c0_i32 : i32, i32
  }
  func.func @transform_2(%arg0: i32) -> (i32, i32) {
    %c0_i32 = arith.constant 0 : i32
    %c0_i32_0 = arith.constant 0 : i32
    %c0_i32_1 = arith.constant 0 : i32
    return %c0_i32, %c0_i32_0 : i32, i32
  }
  func.func @transform_3(%arg0: i32) -> (i32, i32) {
    %c0_i32 = arith.constant 0 : i32
    %c0_i32_0 = arith.constant 0 : i32
    return %arg0, %c0_i32 : i32, i32
  }
}

</mosaic_0001>

<llo_original>
// kernel: tpu_custom_call.1
$region0: #{tpu_custom_call.1}
  #allocation0 [shape = 'u32[]', space=smem, size = 0x4, offset = 0x4, fixed_abs, tag = 'smem constant byte address 0x4 - core index']
  #allocation1 [shape = 'u32[72,128]{1,0:T(1,128)}', space=vmem, size = 0x9000, scoped, tag = 'internal scratch']
  %s0 = inlined_call_operand.vmem [shape: f32[200,16], index: 0, kind: input, shape index: {}]
  %s1 = inlined_call_operand.vmem [shape: f32[200,8], index: 1, kind: input, shape index: {}]
  %s2 = inlined_call_operand.vmem [shape: f32[16,1024], index: 2, kind: input, shape index: {}]
  %s3 = inlined_call_operand.hbm [shape: f32[200,1024], index: 3, kind: output, shape index: {}]
  %s4 = sld [smem:[#allocation0]]
  $region45: #{tpu_custom_call.1} parent=0
    _
  %s6 = ssub.s32 1, %s4
  %s7 = scalar_select 0, %s6, %s4
  $region1: #{tpu_custom_call.1} parent=0
    #allocation2 [shape = 'u8[524288]{0}', space=vmem, size = 0x80000, scoped, tag = 'output window, operand 0']
    #allocation3 [shape = 's32[2]{0}', space=sflag, size = 0x8, scoped, tag = 'scoped memory for tpu_custom_call.1']
    %8 = vsyncpa [#allocation3], 0
    %s9 = scalar_lea.sflag [#allocation3], 1
    %10 = vsyncpa %s9, 0
    loop: start=0, step=1, limit=6
    $region2: #{tpu_custom_call.1} parent=1 // loop_pre_header
      _
    $region3: #{tpu_custom_call.1} parent=1 // loop_header
      %s12 = sphi 0, %s16
      %p13 = scmp.ge.s32.totalorder %s12, 6
      %s22 = sphi 0, %s24
      %s25 = sphi 0, %s22
      %s26 = sphi 0, %s25
      %s42 = sphi 0, %s26
      %s48 = sphi 0, %s50
      %s51 = sphi 0, %s48
      %s52 = sphi 0, %s51
      %s68 = sphi 0, %s52
      %s72 = sphi 0, %s72
      %s74 = sphi 0, %s72
      %s75 = sphi 0, %s74
      %s89 = sphi 0, %s75
      %s95 = sphi 0, %s97
      %s98 = sphi 0, %s95
      %s99 = sphi 0, %s98
      %s115 = sphi 0, %s99
    $region4: #{tpu_custom_call.1} parent=1 // loop_header_branch
      %15 = sbr.rel (%p13) target = $region8
    $region5: #{tpu_custom_call.1} parent=1 // loop_body
      %s17 = ssub.s32 %s12, 1
      %s18 = ssub.s32 %s12, 2
      %s19 = sadd.s32 %s12, 1
      %s20 = ssub.s32 %s12, %s19
      %p21 = scmp.eq.s32.totalorder %s20, 0
      %s23 = sadd.s32 %s22, 1
      %s24 = scalar_select %p21, %s22, %s23
      %p27 = pneg %p21
      %p28 = scmp.eq.s32.totalorder %s12, 3
      %p29 = por %p27, %p28
      %p30 = scmp.ne.s32.totalorder %s22, %s25
      %p31 = scmp.eq.s32.totalorder %s12, 0
      %p32 = por %p30, %p31
      %p33 = scmp.ne.s32.totalorder %s22, %s25
      %p34 = scmp.eq.s32.totalorder %s17, 3
      %p35 = por %p33, %p34
      %p36 = scmp.ne.s32.totalorder %s25, %s26
      %p37 = scmp.eq.s32.totalorder %s17, 0
      %p38 = por %p36, %p37
      %p39 = scmp.ne.s32.totalorder %s25, %s26
      %p40 = scmp.eq.s32.totalorder %s18, 3
      %p41 = por %p39, %p40
      %p43 = scmp.ne.s32.totalorder %s26, %s42
      %p44 = scmp.eq.s32.totalorder %s18, 0
      %p45 = por %p43, %p44
      %s46 = ssub.s32 %s12, %s19
      %p47 = scmp.eq.s32.totalorder %s46, 0
      %s49 = sadd.s32 %s48, 1
      %s50 = scalar_select %p47, %s48, %s49
      %p53 = pneg %p47
      %p54 = scmp.eq.s32.totalorder %s12, 3
      %p55 = por %p53, %p54
      %p56 = scmp.ne.s32.totalorder %s48, %s51
      %p57 = scmp.eq.s32.totalorder %s12, 0
      %p58 = por %p56, %p57
      %p59 = scmp.ne.s32.totalorder %s48, %s51
      %p60 = scmp.eq.s32.totalorder %s17, 3
      %p61 = por %p59, %p60
      %p62 = scmp.ne.s32.totalorder %s51, %s52
      %p63 = scmp.eq.s32.totalorder %s17, 0
      %p64 = por %p62, %p63
      %p65 = scmp.ne.s32.totalorder %s51, %s52
      %p66 = scmp.eq.s32.totalorder %s18, 3
      %p67 = por %p65, %p66
      %p69 = scmp.ne.s32.totalorder %s52, %s68
      %p70 = scmp.eq.s32.totalorder %s18, 0
      %p71 = por %p69, %p70
      %s73 = sadd.s32 %s72, 1
      %p76 = scmp.eq.s32.totalorder %s12, 3
      %p77 = scmp.ne.s32.totalorder %s72, %s74
      %p78 = scmp.eq.s32.totalorder %s12, 0
      %p79 = por %p77, %p78
      %p80 = scmp.ne.s32.totalorder %s72, %s74
      %p81 = scmp.eq.s32.totalorder %s17, 3
      %p82 = por %p80, %p81
      %p83 = scmp.ne.s32.totalorder %s74, %s75
      %p84 = scmp.eq.s32.totalorder %s17, 0
      %p85 = por %p83, %p84
      %p86 = scmp.ne.s32.totalorder %s74, %s75
      %p87 = scmp.eq.s32.totalorder %s18, 3
      %p88 = por %p86, %p87
      %p90 = scmp.ne.s32.totalorder %s75, %s89
      %p91 = scmp.eq.s32.totalorder %s18, 0
      %p92 = por %p90, %p91
      %s93 = ssub.s32 %s12, %s19
      %p94 = scmp.eq.s32.totalorder %s93, 0
      %s96 = sadd.s32 %s95, 1
      %s97 = scalar_select %p94, %s95, %s96
      %p100 = pneg %p94
      %p101 = scmp.eq.s32.totalorder %s12, 3
      %p102 = por %p100, %p101
      %p103 = scmp.ne.s32.totalorder %s95, %s98
      %p104 = scmp.eq.s32.totalorder %s12, 0
      %p105 = por %p103, %p104
      %p106 = scmp.ne.s32.totalorder %s95, %s98
      %p107 = scmp.eq.s32.totalorder %s17, 3
      %p108 = por %p106, %p107
      %p109 = scmp.ne.s32.totalorder %s98, %s99
      %p110 = scmp.eq.s32.totalorder %s17, 0
      %p111 = por %p109, %p110
      %p112 = scmp.ne.s32.totalorder %s98, %s99
      %p113 = scmp.eq.s32.totalorder %s18, 3
      %p114 = por %p112, %p113
      %p116 = scmp.ne.s32.totalorder %s99, %s115
      %p117 = scmp.eq.s32.totalorder %s18, 0
      %p118 = por %p116, %p117
      %p119 = scmp.le.s32.totalorder 1, %s12
      %p120 = scmp.lt.s32.totalorder %s12, 5
      %p121 = pnand %p119, %p120
      %p122 = pneg %p121
      // Predicated region
      $region9: #{tpu_custom_call.1} parent=5 // pred_check
        _
      $region10: #{tpu_custom_call.1} parent=5 // pred_check_branch
        %124 = sbr.rel (%p121) target = $region12
      $region11: #{tpu_custom_call.1} parent=5 // pred_region
        %s125 = ssub.s32 %s12, 1
        // Predicated region
        $region13: #{tpu_custom_call.1} parent=11 // pred_check
          %p126 = pneg %p85
        $region14: #{tpu_custom_call.1} parent=11 // pred_check_branch
          %128 = sbr.rel (%p126) target = $region16
        $region15: #{tpu_custom_call.1} parent=11 // pred_region
          _
        $region16: #{tpu_custom_call.1} parent=11 // pred_fallthru
          _
      $region12: #{tpu_custom_call.1} parent=5 // pred_fallthru
        _
      %p129 = scmp.lt.s32.totalorder %s12, 4
      // Predicated region
      $region17: #{tpu_custom_call.1} parent=5 // pred_check
        %p130 = pneg %p129
      $region18: #{tpu_custom_call.1} parent=5 // pred_check_branch
        %132 = sbr.rel (%p130) target = $region20
      $region19: #{tpu_custom_call.1} parent=5 // pred_region
        // Predicated region
        $region21: #{tpu_custom_call.1} parent=19 // pred_check
          %p133 = pneg %p32
        $region22: #{tpu_custom_call.1} parent=19 // pred_check_branch
          %135 = sbr.rel (%p133) target = $region24
        $region23: #{tpu_custom_call.1} parent=19 // pred_region
          %s136 = smul.u32 8, %s12
          %s137 = ssub.s32 25, %s136
          %p138 = scmp.lt.s32.totalorder %s137, 8
          %s139 = scalar_select %p138, %s137, 8
          %s140 = smul.u32 8, %s139
          %p141 = scmp.lt.s32.totalorder %s136, 24
          %s142 = scalar_select %p141, %s136, 24
          %s143 = smul.addr %s142, 8
          %s144 = scalar_lea.vmem %s0, %s143
          %s145 = smul.u32 8, %s12
          %s146 = ssub.s32 25, %s145
          %p147 = scmp.lt.s32.totalorder %s146, 8
          %s148 = scalar_select %p147, %s146, 8
          %s149 = smul.u32 8, %s148
        $region24: #{tpu_custom_call.1} parent=19 // pred_fallthru
          _
        // Predicated region
        $region25: #{tpu_custom_call.1} parent=19 // pred_check
          %p150 = pneg %p58
        $region26: #{tpu_custom_call.1} parent=19 // pred_check_branch
          %152 = sbr.rel (%p150) target = $region28
        $region27: #{tpu_custom_call.1} parent=19 // pred_region
          %s153 = smul.u32 8, %s12
          %s154 = ssub.s32 25, %s153
          %p155 = scmp.lt.s32.totalorder %s154, 8
          %s156 = scalar_select %p155, %s154, 8
          %s157 = smul.u32 8, %s156
          %p158 = scmp.lt.s32.totalorder %s153, 24
          %s159 = scalar_select %p158, %s153, 24
          %s160 = smul.addr %s159, 8
          %s161 = scalar_lea.vmem %s1, %s160
          %s162 = smul.u32 8, %s12
          %s163 = ssub.s32 25, %s162
          %p164 = scmp.lt.s32.totalorder %s163, 8
          %s165 = scalar_select %p164, %s163, 8
          %s166 = smul.u32 8, %s165
        $region28: #{tpu_custom_call.1} parent=19 // pred_fallthru
          _
      $region20: #{tpu_custom_call.1} parent=5 // pred_fallthru
        _
      %p167 = scmp.le.s32.totalorder 1, %s12
      %p168 = scmp.lt.s32.totalorder %s12, 5
      %p169 = pnand %p167, %p168
      %p170 = pneg %p169
      // Predicated region
      $region29: #{tpu_custom_call.1} parent=5 // pred_check
        _
      $region30: #{tpu_custom_call.1} parent=5 // pred_check_branch
        %172 = sbr.rel (%p169) target = $region32
      $region31: #{tpu_custom_call.1} parent=5 // pred_region
        %s173 = ssub.s32 %s12, 1
        %s174 = smul.u32 8, %s17
        %s175 = ssub.s32 25, %s174
        %p176 = scmp.lt.s32.totalorder %s175, 8
        %s177 = scalar_select %p176, %s175, 8
        %s178 = smul.u32 8, %s177
        %p179 = scmp.lt.s32.totalorder %s174, 24
        %s180 = scalar_select %p179, %s174, 24
        %s181 = smul.addr %s180, 8
        %s182 = scalar_lea.vmem %s0, %s181
        %p183 = pneg %p38
        %p184 = pneg %p35
        %s185 = smul.u32 8, %s17
        %s186 = ssub.s32 25, %s185
        %p187 = scmp.lt.s32.totalorder %s186, 8
        %s188 = scalar_select %p187, %s186, 8
        %s189 = smul.u32 8, %s188
        %p190 = scmp.lt.s32.totalorder %s185, 24
        %s191 = scalar_select %p190, %s185, 24
        %s192 = smul.addr %s191, 8
        %s193 = scalar_lea.vmem %s1, %s192
        %p194 = pneg %p64
        %p195 = pneg %p61
        %p196 = pneg %p85
        %p197 = pneg %p82
        %p198 = pneg %p111
        %p199 = pneg %p108
        %s200 = sand.u32 %s98, 1
        %s201 = scalar_lea.sflag [#allocation3], %s200
        %s202 = sand.u32 %s98, 1
        %s203 = smul.addr %s202, 512
        %s204 = scalar_lea.vmem [#allocation2], %s203
        %s205 = smul.u32 8, %s17
        %s206 = ssub.s32 25, %s205
        %p207 = scmp.lt.s32.totalorder %s206, 8
        %s208 = scalar_select %p207, %s206, 8
        %s209 = smul.u32 8, %s208
        %p210 = scmp.lt.s32.totalorder %s205, 24
        %s211 = scalar_select %p210, %s205, 24
        %s212 = smul.addr %s211, 8
        %s213 = scalar_lea.vmem %s0, %s212
        %s214 = smul.u32 8, %s17
        %s215 = ssub.s32 25, %s214
        %p216 = scmp.lt.s32.totalorder %s215, 8
        %s217 = scalar_select %p216, %s215, 8
        %s218 = smul.u32 8, %s217
        %s219 = smul.u32 8, %s17
        %s220 = ssub.s32 25, %s219
        %p221 = scmp.lt.s32.totalorder %s220, 8
        %s222 = scalar_select %p221, %s220, 8
        %s223 = smul.u32 8, %s222
        %p224 = scmp.lt.s32.totalorder %s219, 24
        %s225 = scalar_select %p224, %s219, 24
        %s226 = smul.addr %s225, 8
        %s227 = scalar_lea.vmem %s1, %s226
        %s228 = smul.u32 8, %s17
        %s229 = ssub.s32 25, %s228
        %p230 = scmp.lt.s32.totalorder %s229, 8
        %s231 = scalar_select %p230, %s229, 8
        %s232 = smul.u32 8, %s231
        %s233 = smul.u32 8, %s17
        %s234 = ssub.s32 25, %s233
        %p235 = scmp.lt.s32.totalorder %s234, 8
        %s236 = scalar_select %p235, %s234, 8
        %s237 = smul.u32 8, %s236
        %s238 = smul.u32 %s237, 8
        %v239 = vld [vmem:[%s213] sm:$0xff]
        %v240 = vld [vmem:[%s213 + $0x8] sm:$0xff]
        %v241 = vld [vmem:[%s213 + $0x10] sm:$0xff]
        %v242 = vld [vmem:[%s213 + $0x18] sm:$0xff]
        %v243 = vld [vmem:[%s213 + $0x20] sm:$0xff]
        %v244 = vld [vmem:[%s213 + $0x28] sm:$0xff]
        %v245 = vld [vmem:[%s213 + $0x30] sm:$0xff]
        %v246 = vld [vmem:[%s213 + $0x38] sm:$0xff]
        %v247 = vld [vmem:[%s227] sm:$0xff]
        %v248 = vld [vmem:[%s227 + $0x8] sm:$0xff]
        %v249 = vld [vmem:[%s227 + $0x10] sm:$0xff]
        %v250 = vld [vmem:[%s227 + $0x18] sm:$0xff]
        %v251 = vld [vmem:[%s227 + $0x20] sm:$0xff]
        %v252 = vld [vmem:[%s227 + $0x28] sm:$0xff]
        %v253 = vld [vmem:[%s227 + $0x30] sm:$0xff]
        %v254 = vld [vmem:[%s227 + $0x38] sm:$0xff]
        %256 = vset.pattern.permute.xlu0 0
        %257 = vperm.xlu0 %256, %v247
        %v258 = vpop.permute.xlu0 %257
        %261 = vset.pattern.permute.xlu0 0
        %262 = vperm.xlu0 %261, %v248
        %v263 = vpop.permute.xlu0 %262
        %266 = vset.pattern.permute.xlu0 0
        %267 = vperm.xlu0 %266, %v249
        %v268 = vpop.permute.xlu0 %267
        %271 = vset.pattern.permute.xlu0 0
        %272 = vperm.xlu0 %271, %v250
        %v273 = vpop.permute.xlu0 %272
        %276 = vset.pattern.permute.xlu0 0
        %277 = vperm.xlu0 %276, %v251
        %v278 = vpop.permute.xlu0 %277
        %281 = vset.pattern.permute.xlu0 0
        %282 = vperm.xlu0 %281, %v252
        %v283 = vpop.permute.xlu0 %282
        %286 = vset.pattern.permute.xlu0 0
        %287 = vperm.xlu0 %286, %v253
        %v288 = vpop.permute.xlu0 %287
        %291 = vset.pattern.permute.xlu0 0
        %292 = vperm.xlu0 %291, %v254
        %v293 = vpop.permute.xlu0 %292
        %v295 = vmul.f32 %v239, %v258
        %v296 = vmul.f32 %v240, %v263
        %v297 = vmul.f32 %v241, %v268
        %v298 = vmul.f32 %v242, %v273
        %v299 = vmul.f32 %v243, %v278
        %v300 = vmul.f32 %v244, %v283
        %v301 = vmul.f32 %v245, %v288
        %v302 = vmul.f32 %v246, %v293
        %v303 = vld [vmem:[%s2] sm:$0xff]
        %v304 = vld [vmem:[%s2 + $0x40] sm:$0xff]
        %vm305 = vcmask 130048
        %v307 = vsel %vm305, %v295, 0
        %v310 = vsel %vm305, %v296, 0
        %v313 = vsel %vm305, %v297, 0
        %v316 = vsel %vm305, %v298, 0
        %v319 = vsel %vm305, %v299, 0
        %v322 = vsel %vm305, %v300, 0
        %v325 = vsel %vm305, %v301, 0
        %v328 = vsel %vm305, %v302, 0
        %330 = vmatpush.msra.mxu0 0.0
        %331 = vmatpush.msra.mxu0 0.0
        %332 = vmatpush.msra.mxu0 0.0
        %333 = vmatpush.msra.mxu0 0.0
        %334 = vmatpush.msra.mxu0 0.0
        %335 = vmatpush.msra.mxu0 0.0
        %336 = vmatpush.msra.mxu0 0.0
        %337 = vmatpush.msra.mxu0 0.0
        %338 = vmatpush.msra.mxu0 0.0
        %339 = vmatpush.msra.mxu0 0.0
        %340 = vmatpush.msra.mxu0 0.0
        %341 = vmatpush.msra.mxu0 0.0
        %342 = vmatpush.msra.mxu0 0.0
        %343 = vmatpush.msra.mxu0 0.0
        %344 = vmatpush.msra.mxu0 %v304
        %345 = vmatpush.msra.mxu0 %v303
        %346 = vmatmul.f32.gmra.mxu0 %v307
        %v347 = vpop.f32.mrf.mxu0
        %v348 = vadd.f32 0.0, %v347
        %349 = vmatmul.f32.gmra.mxu0 %v310
        %v350 = vpop.f32.mrf.mxu0
        %v351 = vadd.f32 0.0, %v350
        %352 = vmatmul.f32.gmra.mxu0 %v313
        %v353 = vpop.f32.mrf.mxu0
        %v354 = vadd.f32 0.0, %v353
        %355 = vmatmul.f32.gmra.mxu0 %v316
        %v356 = vpop.f32.mrf.mxu0
        %v357 = vadd.f32 0.0, %v356
        %358 = vmatmul.f32.gmra.mxu0 %v319
        %v359 = vpop.f32.mrf.mxu0
        %v360 = vadd.f32 0.0, %v359
        %361 = vmatmul.f32.gmra.mxu0 %v322
        %v362 = vpop.f32.mrf.mxu0
        %v363 = vadd.f32 0.0, %v362
        %364 = vmatmul.f32.gmra.mxu0 %v325
        %v365 = vpop.f32.mrf.mxu0
        %v366 = vadd.f32 0.0, %v365
        %367 = vmatmul.f32.gmra.mxu0 %v328
        %v368 = vpop.f32.mrf.mxu0
        %v369 = vadd.f32 0.0, %v368
        %370 = vdwg.mxu0
        %371 = vst [vmem:[%s204] sm:$0xff] %v348
        %372 = vst [vmem:[%s204 + $0x40] sm:$0xff] %v351
        %373 = vst [vmem:[%s204 + $0x80] sm:$0xff] %v354
        %374 = vst [vmem:[%s204 + $0xc0] sm:$0xff] %v357
        %375 = vst [vmem:[%s204 + $0x100] sm:$0xff] %v360
        %376 = vst [vmem:[%s204 + $0x140] sm:$0xff] %v363
        %377 = vst [vmem:[%s204 + $0x180] sm:$0xff] %v366
        %378 = vst [vmem:[%s204 + $0x1c0] sm:$0xff] %v369
        %379 = vset.pattern.permute.xlu0 1
        %380 = vperm.xlu0 %379, %v247
        %v381 = vpop.permute.xlu0 %380
        %383 = vset.pattern.permute.xlu0 1
        %384 = vperm.xlu0 %383, %v248
        %v385 = vpop.permute.xlu0 %384
        %387 = vset.pattern.permute.xlu0 1
        %388 = vperm.xlu0 %387, %v249
        %v389 = vpop.permute.xlu0 %388
        %391 = vset.pattern.permute.xlu0 1
        %392 = vperm.xlu0 %391, %v250
        %v393 = vpop.permute.xlu0 %392
        %395 = vset.pattern.permute.xlu0 1
        %396 = vperm.xlu0 %395, %v251
        %v397 = vpop.permute.xlu0 %396
        %399 = vset.pattern.permute.xlu0 1
        %400 = vperm.xlu0 %399, %v252
        %v401 = vpop.permute.xlu0 %400
        %403 = vset.pattern.permute.xlu0 1
        %404 = vperm.xlu0 %403, %v253
        %v405 = vpop.permute.xlu0 %404
        %407 = vset.pattern.permute.xlu0 1
        %408 = vperm.xlu0 %407, %v254
        %v409 = vpop.permute.xlu0 %408
        %v411 = vmul.f32 %v239, %v381
        %v412 = vmul.f32 %v240, %v385
        %v413 = vmul.f32 %v241, %v389
        %v414 = vmul.f32 %v242, %v393
        %v415 = vmul.f32 %v243, %v397
        %v416 = vmul.f32 %v244, %v401
        %v417 = vmul.f32 %v245, %v405
        %v418 = vmul.f32 %v246, %v409
        %v419 = vld [vmem:[%s2 + $0x8] sm:$0xff]
        %v420 = vld [vmem:[%s2 + $0x48] sm:$0xff]
        %v422 = vsel %vm305, %v411, 0
        %v425 = vsel %vm305, %v412, 0
        %v428 = vsel %vm305, %v413, 0
        %v431 = vsel %vm305, %v414, 0
        %v434 = vsel %vm305, %v415, 0
        %v437 = vsel %vm305, %v416, 0
        %v440 = vsel %vm305, %v417, 0
        %v443 = vsel %vm305, %v418, 0
        %445 = vmatpush.msra.mxu0 0.0
        %446 = vmatpush.msra.mxu0 0.0
        %447 = vmatpush.msra.mxu0 0.0
        %448 = vmatpush.msra.mxu0 0.0
        %449 = vmatpush.msra.mxu0 0.0
        %450 = vmatpush.msra.mxu0 0.0
        %451 = vmatpush.msra.mxu0 0.0
        %452 = vmatpush.msra.mxu0 0.0
        %453 = vmatpush.msra.mxu0 0.0
        %454 = vmatpush.msra.mxu0 0.0
        %455 = vmatpush.msra.mxu0 0.0
        %456 = vmatpush.msra.mxu0 0.0
        %457 = vmatpush.msra.mxu0 0.0
        %458 = vmatpush.msra.mxu0 0.0
        %459 = vmatpush.msra.mxu0 %v420
        %460 = vmatpush.msra.mxu0 %v419
        %461 = vmatmul.f32.gmra.mxu0 %v422
        %v462 = vpop.f32.mrf.mxu0
        %v463 = vadd.f32 0.0, %v462
        %464 = vmatmul.f32.gmra.mxu0 %v425
        %v465 = vpop.f32.mrf.mxu0
        %v466 = vadd.f32 0.0, %v465
        %467 = vmatmul.f32.gmra.mxu0 %v428
        %v468 = vpop.f32.mrf.mxu0
        %v469 = vadd.f32 0.0, %v468
        %470 = vmatmul.f32.gmra.mxu0 %v431
        %v471 = vpop.f32.mrf.mxu0
        %v472 = vadd.f32 0.0, %v471
        %473 = vmatmul.f32.gmra.mxu0 %v434
        %v474 = vpop.f32.mrf.mxu0
        %v475 = vadd.f32 0.0, %v474
        %476 = vmatmul.f32.gmra.mxu0 %v437
        %v477 = vpop.f32.mrf.mxu0
        %v478 = vadd.f32 0.0, %v477
        %479 = vmatmul.f32.gmra.mxu0 %v440
        %v480 = vpop.f32.mrf.mxu0
        %v481 = vadd.f32 0.0, %v480
        %482 = vmatmul.f32.gmra.mxu0 %v443
        %v483 = vpop.f32.mrf.mxu0
        %v484 = vadd.f32 0.0, %v483
        %485 = vdwg.mxu0
        %486 = vst [vmem:[%s204 + $0x8] sm:$0xff] %v463
        %487 = vst [vmem:[%s204 + $0x48] sm:$0xff] %v466
        %488 = vst [vmem:[%s204 + $0x88] sm:$0xff] %v469
        %489 = vst [vmem:[%s204 + $0xc8] sm:$0xff] %v472
        %490 = vst [vmem:[%s204 + $0x108] sm:$0xff] %v475
        %491 = vst [vmem:[%s204 + $0x148] sm:$0xff] %v478
        %492 = vst [vmem:[%s204 + $0x188] sm:$0xff] %v481
        %493 = vst [vmem:[%s204 + $0x1c8] sm:$0xff] %v484
        %494 = vset.pattern.permute.xlu0 2
        %495 = vperm.xlu0 %494, %v247
        %v496 = vpop.permute.xlu0 %495
        %498 = vset.pattern.permute.xlu0 2
        %499 = vperm.xlu0 %498, %v248
        %v500 = vpop.permute.xlu0 %499
        %502 = vset.pattern.permute.xlu0 2
        %503 = vperm.xlu0 %502, %v249
        %v504 = vpop.permute.xlu0 %503
        %506 = vset.pattern.permute.xlu0 2
        %507 = vperm.xlu0 %506, %v250
        %v508 = vpop.permute.xlu0 %507
        %510 = vset.pattern.permute.xlu0 2
        %511 = vperm.xlu0 %510, %v251
        %v512 = vpop.permute.xlu0 %511
        %514 = vset.pattern.permute.xlu0 2
        %515 = vperm.xlu0 %514, %v252
        %v516 = vpop.permute.xlu0 %515
        %518 = vset.pattern.permute.xlu0 2
        %519 = vperm.xlu0 %518, %v253
        %v520 = vpop.permute.xlu0 %519
        %522 = vset.pattern.permute.xlu0 2
        %523 = vperm.xlu0 %522, %v254
        %v524 = vpop.permute.xlu0 %523
        %v526 = vmul.f32 %v239, %v496
        %v527 = vmul.f32 %v240, %v500
        %v528 = vmul.f32 %v241, %v504
        %v529 = vmul.f32 %v242, %v508
        %v530 = vmul.f32 %v243, %v512
        %v531 = vmul.f32 %v244, %v516
        %v532 = vmul.f32 %v245, %v520
        %v533 = vmul.f32 %v246, %v524
        %v534 = vld [vmem:[%s2 + $0x10] sm:$0xff]
        %v535 = vld [vmem:[%s2 + $0x50] sm:$0xff]
        %v537 = vsel %vm305, %v526, 0
        %v540 = vsel %vm305, %v527, 0
        %v543 = vsel %vm305, %v528, 0
        %v546 = vsel %vm305, %v529, 0
        %v549 = vsel %vm305, %v530, 0
        %v552 = vsel %vm305, %v531, 0
        %v555 = vsel %vm305, %v532, 0
        %v558 = vsel %vm305, %v533, 0
        %560 = vmatpush.msra.mxu0 0.0
        %561 = vmatpush.msra.mxu0 0.0
        %562 = vmatpush.msra.mxu0 0.0
        %563 = vmatpush.msra.mxu0 0.0
        %564 = vmatpush.msra.mxu0 0.0
        %565 = vmatpush.msra.mxu0 0.0
        %566 = vmatpush.msra.mxu0 0.0
        %567 = vmatpush.msra.mxu0 0.0
        %568 = vmatpush.msra.mxu0 0.0
        %569 = vmatpush.msra.mxu0 0.0
        %570 = vmatpush.msra.mxu0 0.0
        %571 = vmatpush.msra.mxu0 0.0
        %572 = vmatpush.msra.mxu0 0.0
        %573 = vmatpush.msra.mxu0 0.0
        %574 = vmatpush.msra.mxu0 %v535
        %575 = vmatpush.msra.mxu0 %v534
        %576 = vmatmul.f32.gmra.mxu0 %v537
        %v577 = vpop.f32.mrf.mxu0
        %v578 = vadd.f32 0.0, %v577
        %579 = vmatmul.f32.gmra.mxu0 %v540
        %v580 = vpop.f32.mrf.mxu0
        %v581 = vadd.f32 0.0, %v580
        %582 = vmatmul.f32.gmra.mxu0 %v543
        %v583 = vpop.f32.mrf.mxu0
        %v584 = vadd.f32 0.0, %v583
        %585 = vmatmul.f32.gmra.mxu0 %v546
        %v586 = vpop.f32.mrf.mxu0
        %v587 = vadd.f32 0.0, %v586
        %588 = vmatmul.f32.gmra.mxu0 %v549
        %v589 = vpop.f32.mrf.mxu0
        %v590 = vadd.f32 0.0, %v589
        %591 = vmatmul.f32.gmra.mxu0 %v552
        %v592 = vpop.f32.mrf.mxu0
        %v593 = vadd.f32 0.0, %v592
        %594 = vmatmul.f32.gmra.mxu0 %v555
        %v595 = vpop.f32.mrf.mxu0
        %v596 = vadd.f32 0.0, %v595
        %597 = vmatmul.f32.gmra.mxu0 %v558
        %v598 = vpop.f32.mrf.mxu0
        %v599 = vadd.f32 0.0, %v598
        %600 = vdwg.mxu0
        %601 = vst [vmem:[%s204 + $0x10] sm:$0xff] %v578
        %602 = vst [vmem:[%s204 + $0x50] sm:$0xff] %v581
        %603 = vst [vmem:[%s204 + $0x90] sm:$0xff] %v584
        %604 = vst [vmem:[%s204 + $0xd0] sm:$0xff] %v587
        %605 = vst [vmem:[%s204 + $0x110] sm:$0xff] %v590
        %606 = vst [vmem:[%s204 + $0x150] sm:$0xff] %v593
        %607 = vst [vmem:[%s204 + $0x190] sm:$0xff] %v596
        %608 = vst [vmem:[%s204 + $0x1d0] sm:$0xff] %v599
        %609 = vset.pattern.permute.xlu0 3
        %610 = vperm.xlu0 %609, %v247
        %v611 = vpop.permute.xlu0 %610
        %613 = vset.pattern.permute.xlu0 3
        %614 = vperm.xlu0 %613, %v248
        %v615 = vpop.permute.xlu0 %614
        %617 = vset.pattern.permute.xlu0 3
        %618 = vperm.xlu0 %617, %v249
        %v619 = vpop.permute.xlu0 %618
        %621 = vset.pattern.permute.xlu0 3
        %622 = vperm.xlu0 %621, %v250
        %v623 = vpop.permute.xlu0 %622
        %625 = vset.pattern.permute.xlu0 3
        %626 = vperm.xlu0 %625, %v251
        %v627 = vpop.permute.xlu0 %626
        %629 = vset.pattern.permute.xlu0 3
        %630 = vperm.xlu0 %629, %v252
        %v631 = vpop.permute.xlu0 %630
        %633 = vset.pattern.permute.xlu0 3
        %634 = vperm.xlu0 %633, %v253
        %v635 = vpop.permute.xlu0 %634
        %637 = vset.pattern.permute.xlu0 3
        %638 = vperm.xlu0 %637, %v254
        %v639 = vpop.permute.xlu0 %638
        %v641 = vmul.f32 %v239, %v611
        %v642 = vmul.f32 %v240, %v615
        %v643 = vmul.f32 %v241, %v619
        %v644 = vmul.f32 %v242, %v623
        %v645 = vmul.f32 %v243, %v627
        %v646 = vmul.f32 %v244, %v631
        %v647 = vmul.f32 %v245, %v635
        %v648 = vmul.f32 %v246, %v639
        %v649 = vld [vmem:[%s2 + $0x18] sm:$0xff]
        %v650 = vld [vmem:[%s2 + $0x58] sm:$0xff]
        %v652 = vsel %vm305, %v641, 0
        %v655 = vsel %vm305, %v642, 0
        %v658 = vsel %vm305, %v643, 0
        %v661 = vsel %vm305, %v644, 0
        %v664 = vsel %vm305, %v645, 0
        %v667 = vsel %vm305, %v646, 0
        %v670 = vsel %vm305, %v647, 0
        %v673 = vsel %vm305, %v648, 0
        %675 = vmatpush.msra.mxu0 0.0
        %676 = vmatpush.msra.mxu0 0.0
        %677 = vmatpush.msra.mxu0 0.0
        %678 = vmatpush.msra.mxu0 0.0
        %679 = vmatpush.msra.mxu0 0.0
        %680 = vmatpush.msra.mxu0 0.0
        %681 = vmatpush.msra.mxu0 0.0
        %682 = vmatpush.msra.mxu0 0.0
        %683 = vmatpush.msra.mxu0 0.0
        %684 = vmatpush.msra.mxu0 0.0
        %685 = vmatpush.msra.mxu0 0.0
        %686 = vmatpush.msra.mxu0 0.0
        %687 = vmatpush.msra.mxu0 0.0
        %688 = vmatpush.msra.mxu0 0.0
        %689 = vmatpush.msra.mxu0 %v650
        %690 = vmatpush.msra.mxu0 %v649
        %691 = vmatmul.f32.gmra.mxu0 %v652
        %v692 = vpop.f32.mrf.mxu0
        %v693 = vadd.f32 0.0, %v692
        %694 = vmatmul.f32.gmra.mxu0 %v655
        %v695 = vpop.f32.mrf.mxu0
        %v696 = vadd.f32 0.0, %v695
        %697 = vmatmul.f32.gmra.mxu0 %v658
        %v698 = vpop.f32.mrf.mxu0
        %v699 = vadd.f32 0.0, %v698
        %700 = vmatmul.f32.gmra.mxu0 %v661
        %v701 = vpop.f32.mrf.mxu0
        %v702 = vadd.f32 0.0, %v701
        %703 = vmatmul.f32.gmra.mxu0 %v664
        %v704 = vpop.f32.mrf.mxu0
        %v705 = vadd.f32 0.0, %v704
        %706 = vmatmul.f32.gmra.mxu0 %v667
        %v707 = vpop.f32.mrf.mxu0
        %v708 = vadd.f32 0.0, %v707
        %709 = vmatmul.f32.gmra.mxu0 %v670
        %v710 = vpop.f32.mrf.mxu0
        %v711 = vadd.f32 0.0, %v710
        %712 = vmatmul.f32.gmra.mxu0 %v673
        %v713 = vpop.f32.mrf.mxu0
        %v714 = vadd.f32 0.0, %v713
        %715 = vdwg.mxu0
        %716 = vst [vmem:[%s204 + $0x18] sm:$0xff] %v693
        %717 = vst [vmem:[%s204 + $0x58] sm:$0xff] %v696
        %718 = vst [vmem:[%s204 + $0x98] sm:$0xff] %v699
        %719 = vst [vmem:[%s204 + $0xd8] sm:$0xff] %v702
        %720 = vst [vmem:[%s204 + $0x118] sm:$0xff] %v705
        %721 = vst [vmem:[%s204 + $0x158] sm:$0xff] %v708
        %722 = vst [vmem:[%s204 + $0x198] sm:$0xff] %v711
        %723 = vst [vmem:[%s204 + $0x1d8] sm:$0xff] %v714
        %724 = vset.pattern.permute.xlu0 4
        %725 = vperm.xlu0 %724, %v247
        %v726 = vpop.permute.xlu0 %725
        %728 = vset.pattern.permute.xlu0 4
        %729 = vperm.xlu0 %728, %v248
        %v730 = vpop.permute.xlu0 %729
        %732 = vset.pattern.permute.xlu0 4
        %733 = vperm.xlu0 %732, %v249
        %v734 = vpop.permute.xlu0 %733
        %736 = vset.pattern.permute.xlu0 4
        %737 = vperm.xlu0 %736, %v250
        %v738 = vpop.permute.xlu0 %737
        %740 = vset.pattern.permute.xlu0 4
        %741 = vperm.xlu0 %740, %v251
        %v742 = vpop.permute.xlu0 %741
        %744 = vset.pattern.permute.xlu0 4
        %745 = vperm.xlu0 %744, %v252
        %v746 = vpop.permute.xlu0 %745
        %748 = vset.pattern.permute.xlu0 4
        %749 = vperm.xlu0 %748, %v253
        %v750 = vpop.permute.xlu0 %749
        %752 = vset.pattern.permute.xlu0 4
        %753 = vperm.xlu0 %752, %v254
        %v754 = vpop.permute.xlu0 %753
        %v756 = vmul.f32 %v239, %v726
        %v757 = vmul.f32 %v240, %v730
        %v758 = vmul.f32 %v241, %v734
        %v759 = vmul.f32 %v242, %v738
        %v760 = vmul.f32 %v243, %v742
        %v761 = vmul.f32 %v244, %v746
        %v762 = vmul.f32 %v245, %v750
        %v763 = vmul.f32 %v246, %v754
        %v764 = vld [vmem:[%s2 + $0x20] sm:$0xff]
        %v765 = vld [vmem:[%s2 + $0x60] sm:$0xff]
        %v767 = vsel %vm305, %v756, 0
        %v770 = vsel %vm305, %v757, 0
        %v773 = vsel %vm305, %v758, 0
        %v776 = vsel %vm305, %v759, 0
        %v779 = vsel %vm305, %v760, 0
        %v782 = vsel %vm305, %v761, 0
        %v785 = vsel %vm305, %v762, 0
        %v788 = vsel %vm305, %v763, 0
        %790 = vmatpush.msra.mxu0 0.0
        %791 = vmatpush.msra.mxu0 0.0
        %792 = vmatpush.msra.mxu0 0.0
        %793 = vmatpush.msra.mxu0 0.0
        %794 = vmatpush.msra.mxu0 0.0
        %795 = vmatpush.msra.mxu0 0.0
        %796 = vmatpush.msra.mxu0 0.0
        %797 = vmatpush.msra.mxu0 0.0
        %798 = vmatpush.msra.mxu0 0.0
        %799 = vmatpush.msra.mxu0 0.0
        %800 = vmatpush.msra.mxu0 0.0
        %801 = vmatpush.msra.mxu0 0.0
        %802 = vmatpush.msra.mxu0 0.0
        %803 = vmatpush.msra.mxu0 0.0
        %804 = vmatpush.msra.mxu0 %v765
        %805 = vmatpush.msra.mxu0 %v764
        %806 = vmatmul.f32.gmra.mxu0 %v767
        %v807 = vpop.f32.mrf.mxu0
        %v808 = vadd.f32 0.0, %v807
        %809 = vmatmul.f32.gmra.mxu0 %v770
        %v810 = vpop.f32.mrf.mxu0
        %v811 = vadd.f32 0.0, %v810
        %812 = vmatmul.f32.gmra.mxu0 %v773
        %v813 = vpop.f32.mrf.mxu0
        %v814 = vadd.f32 0.0, %v813
        %815 = vmatmul.f32.gmra.mxu0 %v776
        %v816 = vpop.f32.mrf.mxu0
        %v817 = vadd.f32 0.0, %v816
        %818 = vmatmul.f32.gmra.mxu0 %v779
        %v819 = vpop.f32.mrf.mxu0
        %v820 = vadd.f32 0.0, %v819
        %821 = vmatmul.f32.gmra.mxu0 %v782
        %v822 = vpop.f32.mrf.mxu0
        %v823 = vadd.f32 0.0, %v822
        %824 = vmatmul.f32.gmra.mxu0 %v785
        %v825 = vpop.f32.mrf.mxu0
        %v826 = vadd.f32 0.0, %v825
        %827 = vmatmul.f32.gmra.mxu0 %v788
        %v828 = vpop.f32.mrf.mxu0
        %v829 = vadd.f32 0.0, %v828
        %830 = vdwg.mxu0
        %831 = vst [vmem:[%s204 + $0x20] sm:$0xff] %v808
        %832 = vst [vmem:[%s204 + $0x60] sm:$0xff] %v811
        %833 = vst [vmem:[%s204 + $0xa0] sm:$0xff] %v814
        %834 = vst [vmem:[%s204 + $0xe0] sm:$0xff] %v817
        %835 = vst [vmem:[%s204 + $0x120] sm:$0xff] %v820
        %836 = vst [vmem:[%s204 + $0x160] sm:$0xff] %v823
        %837 = vst [vmem:[%s204 + $0x1a0] sm:$0xff] %v826
        %838 = vst [vmem:[%s204 + $0x1e0] sm:$0xff] %v829
        %839 = vset.pattern.permute.xlu0 5
        %840 = vperm.xlu0 %839, %v247
        %v841 = vpop.permute.xlu0 %840
        %843 = vset.pattern.permute.xlu0 5
        %844 = vperm.xlu0 %843, %v248
        %v845 = vpop.permute.xlu0 %844
        %847 = vset.pattern.permute.xlu0 5
        %848 = vperm.xlu0 %847, %v249
        %v849 = vpop.permute.xlu0 %848
        %851 = vset.pattern.permute.xlu0 5
        %852 = vperm.xlu0 %851, %v250
        %v853 = vpop.permute.xlu0 %852
        %855 = vset.pattern.permute.xlu0 5
        %856 = vperm.xlu0 %855, %v251
        %v857 = vpop.permute.xlu0 %856
        %859 = vset.pattern.permute.xlu0 5
        %860 = vperm.xlu0 %859, %v252
        %v861 = vpop.permute.xlu0 %860
        %863 = vset.pattern.permute.xlu0 5
        %864 = vperm.xlu0 %863, %v253
        %v865 = vpop.permute.xlu0 %864
        %867 = vset.pattern.permute.xlu0 5
        %868 = vperm.xlu0 %867, %v254
        %v869 = vpop.permute.xlu0 %868
        %v871 = vmul.f32 %v239, %v841
        %v872 = vmul.f32 %v240, %v845
        %v873 = vmul.f32 %v241, %v849
        %v874 = vmul.f32 %v242, %v853
        %v875 = vmul.f32 %v243, %v857
        %v876 = vmul.f32 %v244, %v861
        %v877 = vmul.f32 %v245, %v865
        %v878 = vmul.f32 %v246, %v869
        %v879 = vld [vmem:[%s2 + $0x28] sm:$0xff]
        %v880 = vld [vmem:[%s2 + $0x68] sm:$0xff]
        %v882 = vsel %vm305, %v871, 0
        %v885 = vsel %vm305, %v872, 0
        %v888 = vsel %vm305, %v873, 0
        %v891 = vsel %vm305, %v874, 0
        %v894 = vsel %vm305, %v875, 0
        %v897 = vsel %vm305, %v876, 0
        %v900 = vsel %vm305, %v877, 0
        %v903 = vsel %vm305, %v878, 0
        %905 = vmatpush.msra.mxu0 0.0
        %906 = vmatpush.msra.mxu0 0.0
        %907 = vmatpush.msra.mxu0 0.0
        %908 = vmatpush.msra.mxu0 0.0
        %909 = vmatpush.msra.mxu0 0.0
        %910 = vmatpush.msra.mxu0 0.0
        %911 = vmatpush.msra.mxu0 0.0
        %912 = vmatpush.msra.mxu0 0.0
        %913 = vmatpush.msra.mxu0 0.0
        %914 = vmatpush.msra.mxu0 0.0
        %915 = vmatpush.msra.mxu0 0.0
        %916 = vmatpush.msra.mxu0 0.0
        %917 = vmatpush.msra.mxu0 0.0
        %918 = vmatpush.msra.mxu0 0.0
        %919 = vmatpush.msra.mxu0 %v880
        %920 = vmatpush.msra.mxu0 %v879
        %921 = vmatmul.f32.gmra.mxu0 %v882
        %v922 = vpop.f32.mrf.mxu0
        %v923 = vadd.f32 0.0, %v922
        %924 = vmatmul.f32.gmra.mxu0 %v885
        %v925 = vpop.f32.mrf.mxu0
        %v926 = vadd.f32 0.0, %v925
        %927 = vmatmul.f32.gmra.mxu0 %v888
        %v928 = vpop.f32.mrf.mxu0
        %v929 = vadd.f32 0.0, %v928
        %930 = vmatmul.f32.gmra.mxu0 %v891
        %v931 = vpop.f32.mrf.mxu0
        %v932 = vadd.f32 0.0, %v931
        %933 = vmatmul.f32.gmra.mxu0 %v894
        %v934 = vpop.f32.mrf.mxu0
        %v935 = vadd.f32 0.0, %v934
        %936 = vmatmul.f32.gmra.mxu0 %v897
        %v937 = vpop.f32.mrf.mxu0
        %v938 = vadd.f32 0.0, %v937
        %939 = vmatmul.f32.gmra.mxu0 %v900
        %v940 = vpop.f32.mrf.mxu0
        %v941 = vadd.f32 0.0, %v940
        %942 = vmatmul.f32.gmra.mxu0 %v903
        %v943 = vpop.f32.mrf.mxu0
        %v944 = vadd.f32 0.0, %v943
        %945 = vdwg.mxu0
        %946 = vst [vmem:[%s204 + $0x28] sm:$0xff] %v923
        %947 = vst [vmem:[%s204 + $0x68] sm:$0xff] %v926
        %948 = vst [vmem:[%s204 + $0xa8] sm:$0xff] %v929
        %949 = vst [vmem:[%s204 + $0xe8] sm:$0xff] %v932
        %950 = vst [vmem:[%s204 + $0x128] sm:$0xff] %v935
        %951 = vst [vmem:[%s204 + $0x168] sm:$0xff] %v938
        %952 = vst [vmem:[%s204 + $0x1a8] sm:$0xff] %v941
        %953 = vst [vmem:[%s204 + $0x1e8] sm:$0xff] %v944
        %954 = vset.pattern.permute.xlu0 6
        %955 = vperm.xlu0 %954, %v247
        %v956 = vpop.permute.xlu0 %955
        %958 = vset.pattern.permute.xlu0 6
        %959 = vperm.xlu0 %958, %v248
        %v960 = vpop.permute.xlu0 %959
        %962 = vset.pattern.permute.xlu0 6
        %963 = vperm.xlu0 %962, %v249
        %v964 = vpop.permute.xlu0 %963
        %966 = vset.pattern.permute.xlu0 6
        %967 = vperm.xlu0 %966, %v250
        %v968 = vpop.permute.xlu0 %967
        %970 = vset.pattern.permute.xlu0 6
        %971 = vperm.xlu0 %970, %v251
        %v972 = vpop.permute.xlu0 %971
        %974 = vset.pattern.permute.xlu0 6
        %975 = vperm.xlu0 %974, %v252
        %v976 = vpop.permute.xlu0 %975
        %978 = vset.pattern.permute.xlu0 6
        %979 = vperm.xlu0 %978, %v253
        %v980 = vpop.permute.xlu0 %979
        %982 = vset.pattern.permute.xlu0 6
        %983 = vperm.xlu0 %982, %v254
        %v984 = vpop.permute.xlu0 %983
        %v986 = vmul.f32 %v239, %v956
        %v987 = vmul.f32 %v240, %v960
        %v988 = vmul.f32 %v241, %v964
        %v989 = vmul.f32 %v242, %v968
        %v990 = vmul.f32 %v243, %v972
        %v991 = vmul.f32 %v244, %v976
        %v992 = vmul.f32 %v245, %v980
        %v993 = vmul.f32 %v246, %v984
        %v994 = vld [vmem:[%s2 + $0x30] sm:$0xff]
        %v995 = vld [vmem:[%s2 + $0x70] sm:$0xff]
        %v997 = vsel %vm305, %v986, 0
        %v1000 = vsel %vm305, %v987, 0
        %v1003 = vsel %vm305, %v988, 0
        %v1006 = vsel %vm305, %v989, 0
        %v1009 = vsel %vm305, %v990, 0
        %v1012 = vsel %vm305, %v991, 0
        %v1015 = vsel %vm305, %v992, 0
        %v1018 = vsel %vm305, %v993, 0
        %1020 = vmatpush.msra.mxu0 0.0
        %1021 = vmatpush.msra.mxu0 0.0
        %1022 = vmatpush.msra.mxu0 0.0
        %1023 = vmatpush.msra.mxu0 0.0
        %1024 = vmatpush.msra.mxu0 0.0
        %1025 = vmatpush.msra.mxu0 0.0
        %1026 = vmatpush.msra.mxu0 0.0
        %1027 = vmatpush.msra.mxu0 0.0
        %1028 = vmatpush.msra.mxu0 0.0
        %1029 = vmatpush.msra.mxu0 0.0
        %1030 = vmatpush.msra.mxu0 0.0
        %1031 = vmatpush.msra.mxu0 0.0
        %1032 = vmatpush.msra.mxu0 0.0
        %1033 = vmatpush.msra.mxu0 0.0
        %1034 = vmatpush.msra.mxu0 %v995
        %1035 = vmatpush.msra.mxu0 %v994
        %1036 = vmatmul.f32.gmra.mxu0 %v997
        %v1037 = vpop.f32.mrf.mxu0
        %v1038 = vadd.f32 0.0, %v1037
        %1039 = vmatmul.f32.gmra.mxu0 %v1000
        %v1040 = vpop.f32.mrf.mxu0
        %v1041 = vadd.f32 0.0, %v1040
        %1042 = vmatmul.f32.gmra.mxu0 %v1003
        %v1043 = vpop.f32.mrf.mxu0
        %v1044 = vadd.f32 0.0, %v1043
        %1045 = vmatmul.f32.gmra.mxu0 %v1006
        %v1046 = vpop.f32.mrf.mxu0
        %v1047 = vadd.f32 0.0, %v1046
        %1048 = vmatmul.f32.gmra.mxu0 %v1009
        %v1049 = vpop.f32.mrf.mxu0
        %v1050 = vadd.f32 0.0, %v1049
        %1051 = vmatmul.f32.gmra.mxu0 %v1012
        %v1052 = vpop.f32.mrf.mxu0
        %v1053 = vadd.f32 0.0, %v1052
        %1054 = vmatmul.f32.gmra.mxu0 %v1015
        %v1055 = vpop.f32.mrf.mxu0
        %v1056 = vadd.f32 0.0, %v1055
        %1057 = vmatmul.f32.gmra.mxu0 %v1018
        %v1058 = vpop.f32.mrf.mxu0
        %v1059 = vadd.f32 0.0, %v1058
        %1060 = vdwg.mxu0
        %1061 = vst [vmem:[%s204 + $0x30] sm:$0xff] %v1038
        %1062 = vst [vmem:[%s204 + $0x70] sm:$0xff] %v1041
        %1063 = vst [vmem:[%s204 + $0xb0] sm:$0xff] %v1044
        %1064 = vst [vmem:[%s204 + $0xf0] sm:$0xff] %v1047
        %1065 = vst [vmem:[%s204 + $0x130] sm:$0xff] %v1050
        %1066 = vst [vmem:[%s204 + $0x170] sm:$0xff] %v1053
        %1067 = vst [vmem:[%s204 + $0x1b0] sm:$0xff] %v1056
        %1068 = vst [vmem:[%s204 + $0x1f0] sm:$0xff] %v1059
        %1069 = vset.pattern.permute.xlu0 7
        %1070 = vperm.xlu0 %1069, %v247
        %v1071 = vpop.permute.xlu0 %1070
        %1073 = vset.pattern.permute.xlu0 7
        %1074 = vperm.xlu0 %1073, %v248
        %v1075 = vpop.permute.xlu0 %1074
        %1077 = vset.pattern.permute.xlu0 7
        %1078 = vperm.xlu0 %1077, %v249
        %v1079 = vpop.permute.xlu0 %1078
        %1081 = vset.pattern.permute.xlu0 7
        %1082 = vperm.xlu0 %1081, %v250
        %v1083 = vpop.permute.xlu0 %1082
        %1085 = vset.pattern.permute.xlu0 7
        %1086 = vperm.xlu0 %1085, %v251
        %v1087 = vpop.permute.xlu0 %1086
        %1089 = vset.pattern.permute.xlu0 7
        %1090 = vperm.xlu0 %1089, %v252
        %v1091 = vpop.permute.xlu0 %1090
        %1093 = vset.pattern.permute.xlu0 7
        %1094 = vperm.xlu0 %1093, %v253
        %v1095 = vpop.permute.xlu0 %1094
        %1097 = vset.pattern.permute.xlu0 7
        %1098 = vperm.xlu0 %1097, %v254
        %v1099 = vpop.permute.xlu0 %1098
        %v1101 = vmul.f32 %v239, %v1071
        %v1102 = vmul.f32 %v240, %v1075
        %v1103 = vmul.f32 %v241, %v1079
        %v1104 = vmul.f32 %v242, %v1083
        %v1105 = vmul.f32 %v243, %v1087
        %v1106 = vmul.f32 %v244, %v1091
        %v1107 = vmul.f32 %v245, %v1095
        %v1108 = vmul.f32 %v246, %v1099
        %v1109 = vld [vmem:[%s2 + $0x38] sm:$0xff]
        %v1110 = vld [vmem:[%s2 + $0x78] sm:$0xff]
        %v1112 = vsel %vm305, %v1101, 0
        %v1115 = vsel %vm305, %v1102, 0
        %v1118 = vsel %vm305, %v1103, 0
        %v1121 = vsel %vm305, %v1104, 0
        %v1124 = vsel %vm305, %v1105, 0
        %v1127 = vsel %vm305, %v1106, 0
        %v1130 = vsel %vm305, %v1107, 0
        %v1133 = vsel %vm305, %v1108, 0
        %1135 = vmatpush.msra.mxu0 0.0
        %1136 = vmatpush.msra.mxu0 0.0
        %1137 = vmatpush.msra.mxu0 0.0
        %1138 = vmatpush.msra.mxu0 0.0
        %1139 = vmatpush.msra.mxu0 0.0
        %1140 = vmatpush.msra.mxu0 0.0
        %1141 = vmatpush.msra.mxu0 0.0
        %1142 = vmatpush.msra.mxu0 0.0
        %1143 = vmatpush.msra.mxu0 0.0
        %1144 = vmatpush.msra.mxu0 0.0
        %1145 = vmatpush.msra.mxu0 0.0
        %1146 = vmatpush.msra.mxu0 0.0
        %1147 = vmatpush.msra.mxu0 0.0
        %1148 = vmatpush.msra.mxu0 0.0
        %1149 = vmatpush.msra.mxu0 %v1110
        %1150 = vmatpush.msra.mxu0 %v1109
        %1151 = vmatmul.f32.gmra.mxu0 %v1112
        %v1152 = vpop.f32.mrf.mxu0
        %v1153 = vadd.f32 0.0, %v1152
        %1154 = vmatmul.f32.gmra.mxu0 %v1115
        %v1155 = vpop.f32.mrf.mxu0
        %v1156 = vadd.f32 0.0, %v1155
        %1157 = vmatmul.f32.gmra.mxu0 %v1118
        %v1158 = vpop.f32.mrf.mxu0
        %v1159 = vadd.f32 0.0, %v1158
        %1160 = vmatmul.f32.gmra.mxu0 %v1121
        %v1161 = vpop.f32.mrf.mxu0
        %v1162 = vadd.f32 0.0, %v1161
        %1163 = vmatmul.f32.gmra.mxu0 %v1124
        %v1164 = vpop.f32.mrf.mxu0
        %v1165 = vadd.f32 0.0, %v1164
        %1166 = vmatmul.f32.gmra.mxu0 %v1127
        %v1167 = vpop.f32.mrf.mxu0
        %v1168 = vadd.f32 0.0, %v1167
        %1169 = vmatmul.f32.gmra.mxu0 %v1130
        %v1170 = vpop.f32.mrf.mxu0
        %v1171 = vadd.f32 0.0, %v1170
        %1172 = vmatmul.f32.gmra.mxu0 %v1133
        %v1173 = vpop.f32.mrf.mxu0
        %v1174 = vadd.f32 0.0, %v1173
        %1175 = vdwg.mxu0
        %1176 = vst [vmem:[%s204 + $0x38] sm:$0xff] %v1153
        %1177 = vst [vmem:[%s204 + $0x78] sm:$0xff] %v1156
        %1178 = vst [vmem:[%s204 + $0xb8] sm:$0xff] %v1159
        %1179 = vst [vmem:[%s204 + $0xf8] sm:$0xff] %v1162
        %1180 = vst [vmem:[%s204 + $0x138] sm:$0xff] %v1165
        %1181 = vst [vmem:[%s204 + $0x178] sm:$0xff] %v1168
        %1182 = vst [vmem:[%s204 + $0x1b8] sm:$0xff] %v1171
        %1183 = vst [vmem:[%s204 + $0x1f8] sm:$0xff] %v1174
        %s1184 = sand.u32 %s98, 1
        %s1185 = scalar_lea.sflag [#allocation3], %s1184
        %s1186 = sand.u32 %s98, 1
        %s1187 = smul.addr %s1186, 512
        %s1188 = scalar_lea.vmem [#allocation2], %s1187
        // Predicated region
        $region33: #{tpu_custom_call.1} parent=31 // pred_check
          %p1189 = pneg %p108
        $region34: #{tpu_custom_call.1} parent=31 // pred_check_branch
          %1191 = sbr.rel (%p1189) target = $region36
        $region35: #{tpu_custom_call.1} parent=31 // pred_region
          %s1192 = smul.u32 8, %s17
          %s1193 = ssub.s32 25, %s1192
          %p1194 = scmp.lt.s32.totalorder %s1193, 8
          %s1195 = scalar_select %p1194, %s1193, 8
          %s1196 = smul.u32 8, %s1195
          %s1197 = smul.u32 %s1196, 8
          %s1198 = ssub.s32 512, %s1197
          %s1199 = sshll.u32 %s1198, 4
          %1200 = vsyncadd %s1185, %s1199
          %p1201 = scmp.ne.s32.totalorder 0, %s1197
          %s1202 = smul.addr %s1192, 8
          %s1203 = smul.addr %s1202, 8
          %s1204 = scalar_lea.hbm %s3, %s1203
          %s1205 = smul.u32 64, %s1195
          %s1206 = sshll.u32 %s1188, 4
          %s1207 = int_to_ptr.vmem [resolvable:$true] %s1206
          %s1208 = sshll.u32 %s1204, 4
          %s1209 = int_to_ptr.hbm [resolvable:$true] %s1208
          %s1210 = sshll.u32 %s1205, 4
          %1214 = dma.vmem_to_hbm [thread:$0]  (%p1201), %s1207, %s1210, %s1209, %s1185, 1024, 1024, 64
        $region36: #{tpu_custom_call.1} parent=31 // pred_fallthru
          _
      $region32: #{tpu_custom_call.1} parent=5 // pred_fallthru
        _
      %p1215 = scmp.le.s32.totalorder 2, %s12
      // Predicated region
      $region37: #{tpu_custom_call.1} parent=5 // pred_check
        %p1216 = pneg %p1215
      $region38: #{tpu_custom_call.1} parent=5 // pred_check_branch
        %1218 = sbr.rel (%p1216) target = $region40
      $region39: #{tpu_custom_call.1} parent=5 // pred_region
        %s1219 = ssub.s32 %s12, 2
        // Predicated region
        $region41: #{tpu_custom_call.1} parent=39 // pred_check
          %p1220 = pneg %p114
        $region42: #{tpu_custom_call.1} parent=39 // pred_check_branch
          %1222 = sbr.rel (%p1220) target = $region44
        $region43: #{tpu_custom_call.1} parent=39 // pred_region
          %s1223 = sand.u32 %s99, 1
          %s1224 = scalar_lea.sflag [#allocation3], %s1223
          %s1225 = sand.u32 %s99, 1
          %s1226 = smul.addr %s1225, 512
          %s1227 = scalar_lea.vmem [#allocation2], %s1226
          %1229 = dma.done %s1224, 8192
        $region44: #{tpu_custom_call.1} parent=39 // pred_fallthru
          _
      $region40: #{tpu_custom_call.1} parent=5 // pred_fallthru
        _
    $region6: #{tpu_custom_call.1} parent=1 // loop_footer
      %s16 = sadd.s32 1, %s12
    $region7: #{tpu_custom_call.1} parent=1 // loop_footer_branch
      %11 = sbr.rel target = $region3
    $region8: #{tpu_custom_call.1} parent=1 // loop_exit
      _
    %1230 = vsyncpa [#allocation3], 1
    %s1231 = scalar_lea.sflag [#allocation3], 1
    %1232 = vsyncpa %s1231, 1

</llo_original>
